<compile_context>
chip_gen: v7x
topology: tpu7x:2x2x1
jax: 0.10.0
libtpu: 0.0.40
codegen_flags: <defaults>
</compile_context>

<pallas_src>
import jax
import jax.numpy as jnp
from jax.experimental import pallas as pl
from jax.experimental.pallas import tpu as pltpu


def _round_up(x: int, m: int) -> int:
    return ((x + m - 1) // m) * m


def _cls_head_kernel(x_ref, w_ref, b_ref, o_ref):
    # x_ref: (TB, E)   -- CLS rows only (seq dim squeezed / pre-sliced)
    # w_ref: (E, TC)   -- pre-transposed weight tile (MXU-native: K sublane, N lane)
    # b_ref: (1, TC)   -- zero-padded f32 bias tile
    # o_ref: (TB, TC)
    logits = jnp.dot(x_ref[...], w_ref[...], preferred_element_type=jnp.float32)
    o_ref[...] = (logits + b_ref[...]).astype(o_ref.dtype)   # bias add on VPU (free under MXU drain)


def prepare_cls_head_params(weight, bias, *, use_bf16=False):
    """One-time (init-time) parameter prep -- hoisted out of the per-call path.

    weight: (C, E) in PyTorch nn.Linear layout; bias: (C,).
    Returns:
      w_p: (E, C_pad) transposed + zero-padded weight (MXU-native RHS layout).
      b_p: (1, C_pad) zero-padded f32 bias.
    """
    C, E = weight.shape
    C_pad = _round_up(C, 128)
    w_dtype = jnp.bfloat16 if use_bf16 else weight.dtype
    w_p = jnp.zeros((E, C_pad), dtype=w_dtype).at[:, :C].set(weight.T.astype(w_dtype))
    b_p = jnp.zeros((1, C_pad), dtype=jnp.float32).at[0, :C].set(bias.astype(jnp.float32))
    return w_p, b_p


def classification_head_prepared(x, w_p, b_p, *, n_classes=None,
                                 batch_tile=256, class_tile=1024):
    """x: (B, S, E); w_p/b_p from prepare_cls_head_params. Returns (B, n_classes) f32."""
    B, S, E = x.shape
    Ew, C_pad = w_p.shape
    assert Ew == E, "embedding size mismatch between x and prepared weight"
    C = C_pad if n_classes is None else n_classes

    # ---- CLS extraction strategy -------------------------------------------
    x_itemsize = jnp.dtype(x.dtype).itemsize
    if S > 1 and E * x_itemsize < 512:
        # Tiny CLS rows: one cheap contiguous wrapper slice beats a
        # descriptor-bound strided DMA of E*4-byte segments per batch row.
        x_in = x[:, :1, :]
    else:
        # Large E: keep the in-kernel CLS-only strided fetch (S x less traffic).
        x_in = x
    if w_p.dtype == jnp.bfloat16 and x_in.dtype != jnp.bfloat16:
        x_in = x_in.astype(jnp.bfloat16)          # halve x DMA bytes (v6e/v7x MXU-native)
    x_itemsize = jnp.dtype(x_in.dtype).itemsize
    w_itemsize = jnp.dtype(w_p.dtype).itemsize

    # ---- batch tiling --------------------------------------------------------
    TB = min(batch_tile, _round_up(B, 8))
    if B > 8:
        # Keep >= 2 grid steps over batch so both v7x TensorCores get work.
        TB = min(TB, max(8, _round_up(pl.cdiv(B, 2), 8)))
    B_pad = _round_up(B, TB)
    n_bt = B_pad // TB

    # ---- class tiling (bounds VMEM for large-C heads) -----------------------
    cap = max(128, _round_up(class_tile, 128))
    if C_pad <= cap:
        TC = C_pad
    else:
        TC = 128
        for cand in range(cap, 127, -128):       # largest divisor of C_pad <= cap
            if C_pad % cand == 0:
                TC = cand
                break
    n_ct = C_pad // TC

    grid = (n_bt, n_ct)
    params_invariant = (n_ct == 1)               # weight/bias block fixed across grid

    cost = pl.CostEstimate(
        flops=2 * B * E * C_pad,
        transcendentals=0,
        bytes_accessed=(B * E * x_itemsize + E * C_pad * w_itemsize
                        + C_pad * 4 + B * C_pad * 4),
    )

    # VMEM footprint: double-buffered x & out tiles + weight/bias buffers.
    param_bufs = 1 if params_invariant else 2
    vmem_bytes = (2 * TB * E * x_itemsize
                  + param_bufs * (E * TC * w_itemsize + 8 * TC * 4)
                  + 2 * TB * TC * 4)
    vmem_limit = int(min(64 * 1024 * 1024, 2 * vmem_bytes + (8 << 20)))

    def _call(single_buffer_params: bool):
        x_spec = pl.BlockSpec((TB, pl.Squeezed(), E), lambda i, j: (i, 0, 0))
        if single_buffer_params:
            # Grid-invariant params: single buffer -> half the weight VMEM.
            w_spec = pl.BlockSpec((E, TC), lambda i, j: (0, j),
                                  pipeline_mode=pl.Buffered(1))
            b_spec = pl.BlockSpec((1, TC), lambda i, j: (0, j),
                                  pipeline_mode=pl.Buffered(1))
        else:
            w_spec = pl.BlockSpec((E, TC), lambda i, j: (0, j))
            b_spec = pl.BlockSpec((1, TC), lambda i, j: (0, j))
        return pl.pallas_call(
            _cls_head_kernel,
            out_shape=jax.ShapeDtypeStruct((B_pad, C_pad), jnp.float32),
            grid=grid,
            in_specs=[x_spec, w_spec, b_spec],
            out_specs=pl.BlockSpec((TB, TC), lambda i, j: (i, j)),
            compiler_params=pltpu.CompilerParams(
                dimension_semantics=("parallel", "parallel"),
                vmem_limit_bytes=vmem_limit,
            ),
            cost_estimate=cost,
        )(x_in, w_p, b_p)

    # NOTE: rows [B, B_pad) of the last batch block read past the end of x;
    # those values only land in output rows >= B, which are sliced away below,
    # so rows < B are exact.
    if params_invariant:
        try:
            out_padded = _call(single_buffer_params=True)
        except Exception:
            # pipeline_mode not supported by this jax version -> default buffering.
            out_padded = _call(single_buffer_params=False)
    else:
        out_padded = _call(single_buffer_params=False)

    return out_padded[:B, :C]


def classification_head(x, weight, bias, *, use_bf16=False, **tiling):
    """PyTorch ClassificationHead.forward: Linear(emb_size, n_classes)(x[:, 0]).

    Convenience one-shot path. For repeated forward calls, prefer
    prepare_cls_head_params(...) once + classification_head_prepared(...) so
    the weight pad/transpose is not redone every call.
    """
    w_p, b_p = prepare_cls_head_params(weight, bias, use_bf16=use_bf16)
    return classification_head_prepared(x, w_p, b_p, n_classes=weight.shape[0], **tiling)


if __name__ == "__main__":
    key = jax.random.PRNGKey(0)
    kx, kw, kb = jax.random.split(key, 3)

    B, S, E, C = 2, 8, 32, 3   # small shapes: batch=2, seq=8, emb_size=32, n_classes=3

    x = jax.random.normal(kx, (B, S, E), dtype=jnp.float32)
    bound = 1.0 / (E ** 0.5)
    weight = jax.random.uniform(kw, (C, E), minval=-bound, maxval=bound,
                                dtype=jnp.float32)
    bias = jax.random.uniform(kb, (C,), minval=-bound, maxval=bound,
                              dtype=jnp.float32)

    # Params prepared ONCE (init-time), then reused every forward call.
    w_p, b_p = prepare_cls_head_params(weight, bias)
    out = classification_head_prepared(x, w_p, b_p, n_classes=C)
    out = jax.block_until_ready(out)

    # Reference: same semantics as nn.Linear applied to the CLS token.
    ref = x[:, 0] @ weight.T + bias
    assert out.shape == (B, C)
    assert jnp.allclose(out, ref, atol=1e-5, rtol=1e-5)

    print("KERNEL_OK")
</pallas_src>

<mosaic_0001>
module attributes {stable_mosaic.version = 11 : i64} {
  func.func @_cls_head_kernel(%arg0: i32, %arg1: i32, %arg2: memref<8x1x32xf32, #tpu.memory_space<vmem>>, %arg3: memref<32x128xf32, #tpu.memory_space<vmem>>, %arg4: memref<1x128xf32, #tpu.memory_space<vmem>>, %arg5: memref<8x128xf32, #tpu.memory_space<vmem>>) attributes {dimension_semantics = [#tpu.dimension_semantics<parallel>, #tpu.dimension_semantics<parallel>], iteration_bounds = array<i64: 1, 1>, scalar_prefetch = 0 : i64, scratch_operands = 0 : i64, tpu.core_type = #tpu.core_type<tc>, window_params = [{transform_indices = @transform_0, window_bounds = array<i64: 8, 1, 32>}, {pipeline_mode = #tpu.pipeline_mode<synchronous>, transform_indices = @transform_1, window_bounds = array<i64: 32, 128>}, {pipeline_mode = #tpu.pipeline_mode<synchronous>, transform_indices = @transform_2, window_bounds = array<i64: 1, 128>}, {transform_indices = @transform_3, window_bounds = array<i64: 8, 128>}]} {
    %c0 = arith.constant 0 : index
    %c0_0 = arith.constant 0 : index
    %c0_1 = arith.constant 0 : index
    %0 = vector.load %arg2[%c0, %c0_0, %c0_1] : memref<8x1x32xf32, #tpu.memory_space<vmem>>, vector<8x1x32xf32>
    %1 = vector.shape_cast %0 : vector<8x1x32xf32> to vector<8x32xf32>
    %c0_2 = arith.constant 0 : index
    %c0_3 = arith.constant 0 : index
    %2 = vector.load %arg3[%c0_2, %c0_3] : memref<32x128xf32, #tpu.memory_space<vmem>>, vector<32x128xf32>
    %cst = arith.constant dense<0.000000e+00> : vector<8x128xf32>
    %3 = tpu.matmul %1, %2, %cst {dimension_numbers = #tpu.dot_dimension_numbers<[1], [0], [0], [1], [0, 0, 1, 1], [], []>} : vector<8x32xf32>, vector<32x128xf32>, vector<8x128xf32> -> vector<8x128xf32>
    %c0_4 = arith.constant 0 : index
    %c0_5 = arith.constant 0 : index
    %4 = vector.load %arg4[%c0_4, %c0_5] : memref<1x128xf32, #tpu.memory_space<vmem>>, vector<1x128xf32>
    %5 = vector.broadcast %4 : vector<1x128xf32> to vector<8x128xf32>
    %6 = arith.addf %3, %5 : vector<8x128xf32>
    %c0_6 = arith.constant 0 : index
    %c0_7 = arith.constant 0 : index
    %7 = vector.load %arg5[%c0_6, %c0_7] : memref<8x128xf32, #tpu.memory_space<vmem>>, vector<8x128xf32>
    tpu.vector_store %arg5[%c0_6, %c0_7], %6 {strides = array<i32>} : memref<8x128xf32, #tpu.memory_space<vmem>>, vector<8x128xf32>,
    return
  }
  func.func @transform_0(%arg0: i32, %arg1: i32) -> (i32, i32, i32) {
    %c0_i32 = arith.constant 0 : i32
    %c0_i32_0 = arith.constant 0 : i32
    %c0_i32_1 = arith.constant 0 : i32
    return %arg0, %c0_i32, %c0_i32_0 : i32, i32, i32
  }
  func.func @transform_1(%arg0: i32, %arg1: i32) -> (i32, i32) {
    %c0_i32 = arith.constant 0 : i32
    %c0_i32_0 = arith.constant 0 : i32
    return %c0_i32, %arg1 : i32, i32
  }
  func.func @transform_2(%arg0: i32, %arg1: i32) -> (i32, i32) {
    %c0_i32 = arith.constant 0 : i32
    %c0_i32_0 = arith.constant 0 : i32
    return %c0_i32, %arg1 : i32, i32
  }
  func.func @transform_3(%arg0: i32, %arg1: i32) -> (i32, i32) {
    %c0_i32 = arith.constant 0 : i32
    return %arg0, %arg1 : i32, i32
  }
}

module attributes {stable_mosaic.version = 11 : i64} {
  func.func @_cls_head_kernel(%arg0: i32, %arg1: i32, %arg2: memref<8x1x32xf32, #tpu.memory_space<vmem>>, %arg3: memref<32x128xf32, #tpu.memory_space<vmem>>, %arg4: memref<1x128xf32, #tpu.memory_space<vmem>>, %arg5: memref<8x128xf32, #tpu.memory_space<vmem>>) attributes {dimension_semantics = [#tpu.dimension_semantics<parallel>, #tpu.dimension_semantics<parallel>], iteration_bounds = array<i64: 1, 1>, scalar_prefetch = 0 : i64, scratch_operands = 0 : i64, tpu.core_type = #tpu.core_type<tc>, window_params = [{transform_indices = @transform_0, window_bounds = array<i64: 8, 1, 32>}, {transform_indices = @transform_1, window_bounds = array<i64: 32, 128>}, {transform_indices = @transform_2, window_bounds = array<i64: 1, 128>}, {transform_indices = @transform_3, window_bounds = array<i64: 8, 128>}]} {
    %c0 = arith.constant 0 : index
    %c0_0 = arith.constant 0 : index
    %c0_1 = arith.constant 0 : index
    %0 = vector.load %arg2[%c0, %c0_0, %c0_1] : memref<8x1x32xf32, #tpu.memory_space<vmem>>, vector<8x1x32xf32>
    %1 = vector.shape_cast %0 : vector<8x1x32xf32> to vector<8x32xf32>
    %c0_2 = arith.constant 0 : index
    %c0_3 = arith.constant 0 : index
    %2 = vector.load %arg3[%c0_2, %c0_3] : memref<32x128xf32, #tpu.memory_space<vmem>>, vector<32x128xf32>
    %cst = arith.constant dense<0.000000e+00> : vector<8x128xf32>
    %3 = tpu.matmul %1, %2, %cst {dimension_numbers = #tpu.dot_dimension_numbers<[1], [0], [0], [1], [0, 0, 1, 1], [], []>} : vector<8x32xf32>, vector<32x128xf32>, vector<8x128xf32> -> vector<8x128xf32>
    %c0_4 = arith.constant 0 : index
    %c0_5 = arith.constant 0 : index
    %4 = vector.load %arg4[%c0_4, %c0_5] : memref<1x128xf32, #tpu.memory_space<vmem>>, vector<1x128xf32>
    %5 = vector.broadcast %4 : vector<1x128xf32> to vector<8x128xf32>
    %6 = arith.addf %3, %5 : vector<8x128xf32>
    %c0_6 = arith.constant 0 : index
    %c0_7 = arith.constant 0 : index
    %7 = vector.load %arg5[%c0_6, %c0_7] : memref<8x128xf32, #tpu.memory_space<vmem>>, vector<8x128xf32>
    tpu.vector_store %arg5[%c0_6, %c0_7], %6 {strides = array<i32>} : memref<8x128xf32, #tpu.memory_space<vmem>>, vector<8x128xf32>,
    return
  }
  func.func @transform_0(%arg0: i32, %arg1: i32) -> (i32, i32, i32) {
    %c0_i32 = arith.constant 0 : i32
    %c0_i32_0 = arith.constant 0 : i32
    %c0_i32_1 = arith.constant 0 : i32
    return %arg0, %c0_i32, %c0_i32_0 : i32, i32, i32
  }
  func.func @transform_1(%arg0: i32, %arg1: i32) -> (i32, i32) {
    %c0_i32 = arith.constant 0 : i32
    %c0_i32_0 = arith.constant 0 : i32
    return %c0_i32, %arg1 : i32, i32
  }
  func.func @transform_2(%arg0: i32, %arg1: i32) -> (i32, i32) {
    %c0_i32 = arith.constant 0 : i32
    %c0_i32_0 = arith.constant 0 : i32
    return %c0_i32, %arg1 : i32, i32
  }
  func.func @transform_3(%arg0: i32, %arg1: i32) -> (i32, i32) {
    %c0_i32 = arith.constant 0 : i32
    return %arg0, %arg1 : i32, i32
  }
}

</mosaic_0001>

<llo_original>
// kernel: tpu_custom_call.1
$region0: #{tpu_custom_call.1}
  #allocation0 [shape = 'u32[]', space=smem, size = 0x4, offset = 0x4, fixed_abs, tag = 'smem constant byte address 0x4 - core index']
  #allocation1 [shape = 'u32[144,128]{1,0:T(1,128)}', space=vmem, size = 0x12000, scoped, tag = 'internal scratch']
  %s0 = inlined_call_operand.hbm [shape: f32[2,1,32], index: 0, kind: input, shape index: {}]
  %s1 = inlined_call_operand.hbm [shape: f32[32,128], index: 1, kind: input, shape index: {}]
  %s2 = inlined_call_operand.vmem [shape: f32[1,128], index: 2, kind: input, shape index: {}]
  %s3 = inlined_call_operand.hbm [shape: f32[8,128], index: 3, kind: output, shape index: {}]
  %s4 = sld [smem:[#allocation0]]
  $region30: #{tpu_custom_call.1} parent=0
    _
  %s6 = ssub.s32 1, %s4
  %s7 = scalar_select 0, %s6, %s4
  $region1: #{tpu_custom_call.1} parent=0
    #allocation2 [shape = 'u8[4096]{0}', space=vmem, size = 0x1000, scoped, tag = 'input window, operand 0, single buffered']
    #allocation3 [shape = 's32[1]{0}', space=sflag, size = 0x4, scoped, tag = 'scoped memory for tpu_custom_call.1']
    #allocation4 [shape = 's32[1]{0}', space=sflag, size = 0x4, scoped, tag = 'scoped memory for tpu_custom_call.1']
    #allocation5 [shape = 'u8[16384]{0}', space=vmem, size = 0x4000, scoped, tag = 'input window, operand 1, single buffered']
    #allocation6 [shape = 's32[1]{0}', space=sflag, size = 0x4, scoped, tag = 'scoped memory for tpu_custom_call.1']
    #allocation7 [shape = 'u8[4096]{0}', space=vmem, size = 0x1000, scoped, tag = 'output window, operand 0, single buffered']
    %8 = vsyncpa [#allocation3], 0
    %9 = vsyncpa [#allocation6], 0
    %10 = vsyncpa [#allocation4], 0
    // Predicated region
    $region2: #{tpu_custom_call.1} parent=1 // pred_check
      _
    $region3: #{tpu_custom_call.1} parent=1 // pred_check_branch
      %12 = sbr.rel (0) target = $region5
    $region4: #{tpu_custom_call.1} parent=1 // pred_region
      %s14 = ssub.s32 128, 32
      %15 = vsyncadd [#allocation3], %s14
      %s16 = sshll.u32 [#allocation2], 4
      %s17 = int_to_ptr.vmem [resolvable:$true] %s16
      %22 = dma.hbm_to_vmem [thread:$0]  %s0, 32, %s17, [#allocation3], 16, 16, 1
    $region5: #{tpu_custom_call.1} parent=1 // pred_fallthru
      _
    // Predicated region
    $region6: #{tpu_custom_call.1} parent=1 // pred_check
      _
    $region7: #{tpu_custom_call.1} parent=1 // pred_check_branch
      %24 = sbr.rel (0) target = $region9
    $region8: #{tpu_custom_call.1} parent=1 // pred_region
      %s26 = ssub.s32 512, 512
      %27 = vsyncadd [#allocation6], %s26
      %s28 = sshll.u32 [#allocation5], 4
      %s29 = int_to_ptr.vmem [resolvable:$true] %s28
      %34 = dma.hbm_to_vmem [thread:$0]  %s1, 512, %s29, [#allocation6], 128, 128, 8
    $region9: #{tpu_custom_call.1} parent=1 // pred_fallthru
      _
    // Predicated region
    $region10: #{tpu_custom_call.1} parent=1 // pred_check
      _
    $region11: #{tpu_custom_call.1} parent=1 // pred_check_branch
      %36 = sbr.rel (0) target = $region13
    $region12: #{tpu_custom_call.1} parent=1 // pred_region
      _
    $region13: #{tpu_custom_call.1} parent=1 // pred_fallthru
      _
    // Predicated region
    $region14: #{tpu_custom_call.1} parent=1 // pred_check
      _
    $region15: #{tpu_custom_call.1} parent=1 // pred_check_branch
      %38 = sbr.rel (0) target = $region17
    $region16: #{tpu_custom_call.1} parent=1 // pred_region
      %39 = dma.done [#allocation3], 128
    $region17: #{tpu_custom_call.1} parent=1 // pred_fallthru
      _
    // Predicated region
    $region18: #{tpu_custom_call.1} parent=1 // pred_check
      _
    $region19: #{tpu_custom_call.1} parent=1 // pred_check_branch
      %41 = sbr.rel (0) target = $region21
    $region20: #{tpu_custom_call.1} parent=1 // pred_region
      %42 = dma.done [#allocation6], 512
    $region21: #{tpu_custom_call.1} parent=1 // pred_fallthru
      _
    %v43 = vld [vmem:[#allocation2] sm:$0x1]
    %v44 = vld [vmem:[#allocation2 + $0x1] sm:$0x1]
    %v45 = vld [vmem:[#allocation2 + $0x2] sm:$0x1]
    %v46 = vld [vmem:[#allocation2 + $0x3] sm:$0x1]
    %v47 = vld [vmem:[#allocation2 + $0x4] sm:$0x1]
    %v48 = vld [vmem:[#allocation2 + $0x5] sm:$0x1]
    %v49 = vld [vmem:[#allocation2 + $0x6] sm:$0x1]
    %v50 = vld [vmem:[#allocation2 + $0x7] sm:$0x1]
    %v51 = vld [vmem:[#allocation5] sm:$0xff]
    %v52 = vld [vmem:[#allocation5 + $0x8] sm:$0xff]
    %v53 = vld [vmem:[#allocation5 + $0x10] sm:$0xff]
    %v54 = vld [vmem:[#allocation5 + $0x18] sm:$0xff]
    %v55 = vld [vmem:[%s2] sm:$0x1]
    %v57 = vlaneseq
    %v58 = vshrl.u32 %v57, 7
    %v59 = vsub.s32 0, %v58
    %v60 = vrot.slane %v55, %v59
    %v70 = vcombine.low %v43, %v44
    %v71 = vcombine.low %v45, %v46
    %v72 = vcombine.low %v47, %v48
    %v73 = vcombine.low %v49, %v50
    %v75 = vunpack.c.l.s4 1966171168
    %v76 = vunpack.c.0.s8 %v75
    %v77 = vlaneseq
    %v78 = vshrl.u32 %v77, 7
    %v79 = vsub.s32 %v76, %v78
    %v80 = vrot.slane %v70, %v79
    %v82 = vunpack.c.l.s4 1966171168
    %v83 = vunpack.c.0.s8 %v82
    %v84 = vlaneseq
    %v85 = vshrl.u32 %v84, 7
    %v86 = vsub.s32 %v83, %v85
    %v87 = vrot.slane %v71, %v86
    %v89 = vunpack.c.l.s4 1966171168
    %v90 = vunpack.c.0.s8 %v89
    %v91 = vlaneseq
    %v92 = vshrl.u32 %v91, 7
    %v93 = vsub.s32 %v90, %v92
    %v94 = vrot.slane %v72, %v93
    %v96 = vunpack.c.l.s4 1966171168
    %v97 = vunpack.c.0.s8 %v96
    %v98 = vlaneseq
    %v99 = vshrl.u32 %v98, 7
    %v100 = vsub.s32 %v97, %v99
    %v101 = vrot.slane %v73, %v100
    %v102 = vcombine.low %v80, %v87
    %v103 = vcombine.low %v94, %v101
    %v105 = vunpack.c.l.s4 1966171168
    %v106 = vunpack.c.0.s8 %v105
    %v107 = vlaneseq
    %v108 = vshrl.u32 %v107, 7
    %v109 = vsub.s32 %v106, %v108
    %v110 = vrot.slane %v102, %v109
    %v112 = vunpack.c.l.s4 1966171168
    %v113 = vunpack.c.0.s8 %v112
    %v114 = vlaneseq
    %v115 = vshrl.u32 %v114, 7
    %v116 = vsub.s32 %v113, %v115
    %v117 = vrot.slane %v103, %v116
    %v118 = vcombine.low %v110, %v117
    %vm119 = vcmask 261120
    %v120 = vsel %vm119, %v118, 0
    %122 = vmatprep.subr.mxu0 0.0
    %123 = vmatpush1.msra.mxu0 %v51
    %124 = vmatprep.subr.mxu0 0.0
    %125 = vmatpush1.msra.mxu0 %v52
    %126 = vmatprep.subr.mxu0 0.0
    %127 = vmatpush1.msra.mxu0 %v53
    %128 = vmatprep.subr.mxu0 0.0
    %129 = vmatpush1.msra.mxu0 %v54
    %130 = vmatprep.subr.mxu0 0.0
    %131 = vmatpush1.msra.mxu0 0.0
    %132 = vmatprep.subr.mxu0 0.0
    %133 = vmatpush1.msra.mxu0 0.0
    %134 = vmatprep.subr.mxu0 0.0
    %135 = vmatpush1.msra.mxu0 0.0
    %136 = vmatprep.subr.mxu0 0.0
    %137 = vmatpush1.msra.mxu0 0.0
    %138 = vmatprep.subr.mxu0 0.0
    %139 = vmatpush1.msra.mxu0 0.0
    %140 = vmatprep.subr.mxu0 0.0
    %141 = vmatpush1.msra.mxu0 0.0
    %142 = vmatprep.subr.mxu0 0.0
    %143 = vmatpush1.msra.mxu0 0.0
    %144 = vmatprep.subr.mxu0 0.0
    %145 = vmatpush1.msra.mxu0 0.0
    %146 = vmatprep.subr.mxu0 0.0
    %147 = vmatpush1.msra.mxu0 0.0
    %148 = vmatprep.subr.mxu0 0.0
    %149 = vmatpush1.msra.mxu0 0.0
    %150 = vmatprep.subr.mxu0 0.0
    %151 = vmatpush1.msra.mxu0 0.0
    %152 = vmatprep.subr.mxu0 0.0
    %153 = vmatpush1.msra.mxu0 0.0
    %154 = vmatprep.subr.mxu0 0.0
    %155 = vmatpush1.msra.mxu0 0.0
    %156 = vmatprep.subr.mxu0 0.0
    %157 = vmatpush1.msra.mxu0 0.0
    %158 = vmatprep.subr.mxu0 0.0
    %159 = vmatpush1.msra.mxu0 0.0
    %160 = vmatprep.subr.mxu0 0.0
    %161 = vmatpush1.msra.mxu0 0.0
    %162 = vmatprep.subr.mxu0 0.0
    %163 = vmatpush1.msra.mxu0 0.0
    %164 = vmatprep.subr.mxu0 0.0
    %165 = vmatpush1.msra.mxu0 0.0
    %166 = vmatprep.subr.mxu0 0.0
    %167 = vmatpush1.msra.mxu0 0.0
    %168 = vmatprep.subr.mxu0 0.0
    %169 = vmatpush1.msra.mxu0 0.0
    %170 = vmatprep.subr.mxu0 0.0
    %171 = vmatpush1.msra.mxu0 0.0
    %172 = vmatprep.subr.mxu0 0.0
    %173 = vmatpush1.msra.mxu0 0.0
    %174 = vmatprep.subr.mxu0 0.0
    %175 = vmatpush1.msra.mxu0 0.0
    %176 = vmatprep.subr.mxu0 0.0
    %177 = vmatpush1.msra.mxu0 0.0
    %178 = vmatprep.subr.mxu0 0.0
    %179 = vmatpush1.msra.mxu0 0.0
    %180 = vmatprep.subr.mxu0 0.0
    %181 = vmatpush1.msra.mxu0 0.0
    %182 = vmatprep.subr.mxu0 0.0
    %183 = vmatpush1.msra.mxu0 0.0
    %184 = vmatprep.subr.mxu0 0.0
    %185 = vmatpush1.msra.mxu0 0.0
    %186 = vmatprep.mubr.f32.mxu0 0.0
    %187 = vmatmul.mubr.f32.gmra.mrb[0].mxu0 %v120
    %v188 = vpop.f32.mrb[0].mxu0
    %v189 = vadd.f32 %v60, %v188
    %v190 = vpop.f32.mrb[0].mxu0
    %191 = vdwg.mxu0
    %192 = vst [vmem:[#allocation7] sm:$0xff] %v189
    // Predicated region
    $region22: #{tpu_custom_call.1} parent=1 // pred_check
      _
    $region23: #{tpu_custom_call.1} parent=1 // pred_check_branch
      %194 = sbr.rel (0) target = $region25
    $region24: #{tpu_custom_call.1} parent=1 // pred_region
      %s196 = ssub.s32 128, 128
      %197 = vsyncadd [#allocation4], %s196
      %s199 = sshll.u32 [#allocation7], 4
      %s200 = int_to_ptr.vmem [resolvable:$true] %s199
      %202 = dma.vmem_to_hbm [thread:$0]  %s200, 128, %s3, [#allocation4]
    $region25: #{tpu_custom_call.1} parent=1 // pred_fallthru
      _
    // Predicated region
    $region26: #{tpu_custom_call.1} parent=1 // pred_check
      _
    $region27: #{tpu_custom_call.1} parent=1 // pred_check_branch
      %204 = sbr.rel (0) target = $region29
    $region28: #{tpu_custom_call.1} parent=1 // pred_region
      %205 = dma.done [#allocation4], 128
    $region29: #{tpu_custom_call.1} parent=1 // pred_fallthru
      _
    %206 = vsyncpa [#allocation3], 1
    %207 = vsyncpa [#allocation6], 1
    %208 = vsyncpa [#allocation4], 1

// kernel: tpu_custom_call.1
$region0: #{tpu_custom_call.1}
  #allocation0 [shape = 'u32[]', space=smem, size = 0x4, offset = 0x4, fixed_abs, tag = 'smem constant byte address 0x4 - core index']
  #allocation1 [shape = 'u32[144,128]{1,0:T(1,128)}', space=vmem, size = 0x12000, scoped, tag = 'internal scratch']
  %s0 = inlined_call_operand.hbm [shape: f32[2,1,32], index: 0, kind: input, shape index: {}]
  %s1 = inlined_call_operand.hbm [shape: f32[32,128], index: 1, kind: input, shape index: {}]
  %s2 = inlined_call_operand.vmem [shape: f32[1,128], index: 2, kind: input, shape index: {}]
  %s3 = inlined_call_operand.hbm [shape: f32[8,128], index: 3, kind: output, shape index: {}]
  %s4 = sld [smem:[#allocation0]]
  $region30: #{tpu_custom_call.1} parent=0
    _
  %s6 = ssub.s32 1, %s4
  %s7 = scalar_select 0, %s6, %s4
  $region1: #{tpu_custom_call.1} parent=0
    #allocation2 [shape = 'u8[4096]{0}', space=vmem, size = 0x1000, scoped, tag = 'input window, operand 0, single buffered']
    #allocation3 [shape = 's32[1]{0}', space=sflag, size = 0x4, scoped, tag = 'scoped memory for tpu_custom_call.1']
    #allocation4 [shape = 's32[1]{0}', space=sflag, size = 0x4, scoped, tag = 'scoped memory for tpu_custom_call.1']
    #allocation5 [shape = 'u8[16384]{0}', space=vmem, size = 0x4000, scoped, tag = 'input window, operand 1, single buffered']
    #allocation6 [shape = 's32[1]{0}', space=sflag, size = 0x4, scoped, tag = 'scoped memory for tpu_custom_call.1']
    #allocation7 [shape = 'u8[4096]{0}', space=vmem, size = 0x1000, scoped, tag = 'output window, operand 0, single buffered']
    %8 = vsyncpa [#allocation3], 0
    %9 = vsyncpa [#allocation6], 0
    %10 = vsyncpa [#allocation4], 0
    // Predicated region
    $region2: #{tpu_custom_call.1} parent=1 // pred_check
      _
    $region3: #{tpu_custom_call.1} parent=1 // pred_check_branch
      %12 = sbr.rel (0) target = $region5
    $region4: #{tpu_custom_call.1} parent=1 // pred_region
      %s14 = ssub.s32 128, 32
      %15 = vsyncadd [#allocation3], %s14
      %s16 = sshll.u32 [#allocation2], 4
      %s17 = int_to_ptr.vmem [resolvable:$true] %s16
      %22 = dma.hbm_to_vmem [thread:$0]  %s0, 32, %s17, [#allocation3], 16, 16, 1
    $region5: #{tpu_custom_call.1} parent=1 // pred_fallthru
      _
    // Predicated region
    $region6: #{tpu_custom_call.1} parent=1 // pred_check
      _
    $region7: #{tpu_custom_call.1} parent=1 // pred_check_branch
      %24 = sbr.rel (0) target = $region9
    $region8: #{tpu_custom_call.1} parent=1 // pred_region
      %s26 = ssub.s32 512, 512
      %27 = vsyncadd [#allocation6], %s26
      %s28 = sshll.u32 [#allocation5], 4
      %s29 = int_to_ptr.vmem [resolvable:$true] %s28
      %34 = dma.hbm_to_vmem [thread:$0]  %s1, 512, %s29, [#allocation6], 128, 128, 8
    $region9: #{tpu_custom_call.1} parent=1 // pred_fallthru
      _
    // Predicated region
    $region10: #{tpu_custom_call.1} parent=1 // pred_check
      _
    $region11: #{tpu_custom_call.1} parent=1 // pred_check_branch
      %36 = sbr.rel (0) target = $region13
    $region12: #{tpu_custom_call.1} parent=1 // pred_region
      _
    $region13: #{tpu_custom_call.1} parent=1 // pred_fallthru
      _
    // Predicated region
    $region14: #{tpu_custom_call.1} parent=1 // pred_check
      _
    $region15: #{tpu_custom_call.1} parent=1 // pred_check_branch
      %38 = sbr.rel (0) target = $region17
    $region16: #{tpu_custom_call.1} parent=1 // pred_region
      %39 = dma.done [#allocation3], 128
    $region17: #{tpu_custom_call.1} parent=1 // pred_fallthru
      _
    // Predicated region
    $region18: #{tpu_custom_call.1} parent=1 // pred_check
      _
    $region19: #{tpu_custom_call.1} parent=1 // pred_check_branch
      %41 = sbr.rel (0) target = $region21
    $region20: #{tpu_custom_call.1} parent=1 // pred_region
      %42 = dma.done [#allocation6], 512
    $region21: #{tpu_custom_call.1} parent=1 // pred_fallthru
      _
    %v43 = vld [vmem:[#allocation2] sm:$0x1]
    %v44 = vld [vmem:[#allocation2 + $0x1] sm:$0x1]
    %v45 = vld [vmem:[#allocation2 + $0x2] sm:$0x1]
    %v46 = vld [vmem:[#allocation2 + $0x3] sm:$0x1]
    %v47 = vld [vmem:[#allocation2 + $0x4] sm:$0x1]
    %v48 = vld [vmem:[#allocation2 + $0x5] sm:$0x1]
    %v49 = vld [vmem:[#allocation2 + $0x6] sm:$0x1]
    %v50 = vld [vmem:[#allocation2 + $0x7] sm:$0x1]
    %v51 = vld [vmem:[#allocation5] sm:$0xff]
    %v52 = vld [vmem:[#allocation5 + $0x8] sm:$0xff]
    %v53 = vld [vmem:[#allocation5 + $0x10] sm:$0xff]
    %v54 = vld [vmem:[#allocation5 + $0x18] sm:$0xff]
    %v55 = vld [vmem:[%s2] sm:$0x1]
    %v57 = vlaneseq
    %v58 = vshrl.u32 %v57, 7
    %v59 = vsub.s32 0, %v58
    %v60 = vrot.slane %v55, %v59
    %v70 = vcombine.low %v43, %v44
    %v71 = vcombine.low %v45, %v46
    %v72 = vcombine.low %v47, %v48
    %v73 = vcombine.low %v49, %v50
    %v75 = vunpack.c.l.s4 1966171168
    %v76 = vunpack.c.0.s8 %v75
    %v77 = vlaneseq
    %v78 = vshrl.u32 %v77, 7
    %v79 = vsub.s32 %v76, %v78
    %v80 = vrot.slane %v70, %v79
    %v82 = vunpack.c.l.s4 1966171168
    %v83 = vunpack.c.0.s8 %v82
    %v84 = vlaneseq
    %v85 = vshrl.u32 %v84, 7
    %v86 = vsub.s32 %v83, %v85
    %v87 = vrot.slane %v71, %v86
    %v89 = vunpack.c.l.s4 1966171168
    %v90 = vunpack.c.0.s8 %v89
    %v91 = vlaneseq
    %v92 = vshrl.u32 %v91, 7
    %v93 = vsub.s32 %v90, %v92
    %v94 = vrot.slane %v72, %v93
    %v96 = vunpack.c.l.s4 1966171168
    %v97 = vunpack.c.0.s8 %v96
    %v98 = vlaneseq
    %v99 = vshrl.u32 %v98, 7
    %v100 = vsub.s32 %v97, %v99
    %v101 = vrot.slane %v73, %v100
    %v102 = vcombine.low %v80, %v87
    %v103 = vcombine.low %v94, %v101
    %v105 = vunpack.c.l.s4 1966171168
    %v106 = vunpack.c.0.s8 %v105
    %v107 = vlaneseq
    %v108 = vshrl.u32 %v107, 7
    %v109 = vsub.s32 %v106, %v108
    %v110 = vrot.slane %v102, %v109
    %v112 = vunpack.c.l.s4 1966171168
    %v113 = vunpack.c.0.s8 %v112
    %v114 = vlaneseq
    %v115 = vshrl.u32 %v114, 7
    %v116 = vsub.s32 %v113, %v115
    %v117 = vrot.slane %v103, %v116
    %v118 = vcombine.low %v110, %v117
    %vm119 = vcmask 261120
    %v120 = vsel %vm119, %v118, 0
    %122 = vmatprep.subr.mxu0 0.0
    %123 = vmatpush1.msra.mxu0 %v51
    %124 = vmatprep.subr.mxu0 0.0
    %125 = vmatpush1.msra.mxu0 %v52
    %126 = vmatprep.subr.mxu0 0.0
    %127 = vmatpush1.msra.mxu0 %v53
    %128 = vmatprep.subr.mxu0 0.0
    %129 = vmatpush1.msra.mxu0 %v54
    %130 = vmatprep.subr.mxu0 0.0
    %131 = vmatpush1.msra.mxu0 0.0
    %132 = vmatprep.subr.mxu0 0.0
    %133 = vmatpush1.msra.mxu0 0.0
    %134 = vmatprep.subr.mxu0 0.0
    %135 = vmatpush1.msra.mxu0 0.0
    %136 = vmatprep.subr.mxu0 0.0
    %137 = vmatpush1.msra.mxu0 0.0
    %138 = vmatprep.subr.mxu0 0.0
    %139 = vmatpush1.msra.mxu0 0.0
    %140 = vmatprep.subr.mxu0 0.0
    %141 = vmatpush1.msra.mxu0 0.0
    %142 = vmatprep.subr.mxu0 0.0
    %143 = vmatpush1.msra.mxu0 0.0
    %144 = vmatprep.subr.mxu0 0.0
    %145 = vmatpush1.msra.mxu0 0.0
    %146 = vmatprep.subr.mxu0 0.0
    %147 = vmatpush1.msra.mxu0 0.0
    %148 = vmatprep.subr.mxu0 0.0
    %149 = vmatpush1.msra.mxu0 0.0
    %150 = vmatprep.subr.mxu0 0.0
    %151 = vmatpush1.msra.mxu0 0.0
    %152 = vmatprep.subr.mxu0 0.0
    %153 = vmatpush1.msra.mxu0 0.0
    %154 = vmatprep.subr.mxu0 0.0
    %155 = vmatpush1.msra.mxu0 0.0
    %156 = vmatprep.subr.mxu0 0.0
    %157 = vmatpush1.msra.mxu0 0.0
    %158 = vmatprep.subr.mxu0 0.0
    %159 = vmatpush1.msra.mxu0 0.0
    %160 = vmatprep.subr.mxu0 0.0
    %161 = vmatpush1.msra.mxu0 0.0
    %162 = vmatprep.subr.mxu0 0.0
    %163 = vmatpush1.msra.mxu0 0.0
    %164 = vmatprep.subr.mxu0 0.0
    %165 = vmatpush1.msra.mxu0 0.0
    %166 = vmatprep.subr.mxu0 0.0
    %167 = vmatpush1.msra.mxu0 0.0
    %168 = vmatprep.subr.mxu0 0.0
    %169 = vmatpush1.msra.mxu0 0.0
    %170 = vmatprep.subr.mxu0 0.0
    %171 = vmatpush1.msra.mxu0 0.0
    %172 = vmatprep.subr.mxu0 0.0
    %173 = vmatpush1.msra.mxu0 0.0
    %174 = vmatprep.subr.mxu0 0.0
    %175 = vmatpush1.msra.mxu0 0.0
    %176 = vmatprep.subr.mxu0 0.0
    %177 = vmatpush1.msra.mxu0 0.0
    %178 = vmatprep.subr.mxu0 0.0
    %179 = vmatpush1.msra.mxu0 0.0
    %180 = vmatprep.subr.mxu0 0.0
    %181 = vmatpush1.msra.mxu0 0.0
    %182 = vmatprep.subr.mxu0 0.0
    %183 = vmatpush1.msra.mxu0 0.0
    %184 = vmatprep.subr.mxu0 0.0
    %185 = vmatpush1.msra.mxu0 0.0
    %186 = vmatprep.mubr.f32.mxu0 0.0
    %187 = vmatmul.mubr.f32.gmra.mrb[0].mxu0 %v120
    %v188 = vpop.f32.mrb[0].mxu0
    %v189 = vadd.f32 %v60, %v188
    %v190 = vpop.f32.mrb[0].mxu0
    %191 = vdwg.mxu0
    %192 = vst [vmem:[#allocation7] sm:$0xff] %v189
    // Predicated region
    $region22: #{tpu_custom_call.1} parent=1 // pred_check
      _
    $region23: #{tpu_custom_call.1} parent=1 // pred_check_branch
      %194 = sbr.rel (0) target = $region25
    $region24: #{tpu_custom_call.1} parent=1 // pred_region
      %s196 = ssub.s32 128, 128
      %197 = vsyncadd [#allocation4], %s196
      %s199 = sshll.u32 [#allocation7], 4
      %s200 = int_to_ptr.vmem [resolvable:$true] %s199
      %202 = dma.vmem_to_hbm [thread:$0]  %s200, 128, %s3, [#allocation4]
    $region25: #{tpu_custom_call.1} parent=1 // pred_fallthru
      _
    // Predicated region
    $region26: #{tpu_custom_call.1} parent=1 // pred_check
      _
    $region27: #{tpu_custom_call.1} parent=1 // pred_check_branch
      %204 = sbr.rel (0) target = $region29
    $region28: #{tpu_custom_call.1} parent=1 // pred_region
      %205 = dma.done [#allocation4], 128
    $region29: #{tpu_custom_call.1} parent=1 // pred_fallthru
      _
    %206 = vsyncpa [#allocation3], 1
    %207 = vsyncpa [#allocation6], 1
    %208 = vsyncpa [#allocation4], 1

</llo_original>
